<compile_context>
chip_gen: v6e
topology: v6e:2x2x1
jax: 0.10.0
libtpu: 0.0.40
codegen_flags: <defaults>
</compile_context>

<pallas_src>
import math

import numpy as np

import jax
import jax.numpy as jnp
from jax import lax
from jax.experimental import pallas as pl
from jax.experimental.pallas import tpu as pltpu

# --- SignalIA config (matches the PyTorch defaults with onehot=True, fpos) ---
NUM_FREQ = 32                      # num_frequency_bands
MAX_FREQ = 200.0                   # max_frequency
MIN_FREQ = 1.0                     # _sample_frequency_band default min_freq
MAX_ENUM = 8                       # max_enum
C_IN = 3                           # [x, y, state]
C_AUG = 4                          # [x, y, state, valid]
C_FOURIER = NUM_FREQ * 4           # 128 = sin_x | sin_y | cos_x | cos_y
C_OUT = C_FOURIER + MAX_ENUM       # 136


def _round_up(v, m):
    return ((v + m - 1) // m) * m


def _make_coef_np():
    """Host-side (numpy) [8, 128] sublane-aligned coefficient slab.

    row 0: per-lane multiplier on x     (pi*f on sin_x / cos_x lane groups, else 0)
    row 1: per-lane multiplier on y     (pi*f on sin_y / cos_y lane groups, else 0)
    row 2: per-lane multiplier on valid (pi/2 on the cos groups: cos t = sin(t+pi/2);
           valid=0 rows get phase 0 everywhere -> encoding exactly 0)
    rows 3..7: zero padding (sublane alignment only).
    Lane order matches the reference concat: sin_x | sin_y | cos_x | cos_y.
    """
    f = np.linspace(MIN_FREQ, MAX_FREQ / 2.0, NUM_FREQ).astype(np.float32)
    pif = (math.pi * f).astype(np.float32)
    zeros = np.zeros_like(pif)
    half_pi = np.full_like(pif, math.pi / 2.0)
    wx = np.concatenate([pif, zeros, pif, zeros])     # [128]
    wy = np.concatenate([zeros, pif, zeros, pif])     # [128]
    wv = np.concatenate([zeros, zeros, half_pi, half_pi])
    coef = np.stack([wx, wy, wv], axis=0)             # [3, 128]
    pad = np.zeros((8 - coef.shape[0], C_FOURIER), np.float32)
    return np.concatenate([coef, pad], axis=0)        # [8, 128]


_COEF = _make_coef_np()


def signal_ia_kernel(coef_ref, x_ref, o_ref):
    """coef_ref: [8, 128] f32, x_ref: [tm, 4] f32, o_ref: [tm, 136]."""
    x = x_ref[...]
    px = x[:, 0:1]                                    # [tm, 1]
    py = x[:, 1:2]                                    # [tm, 1]
    state_i = x[:, 2:3].astype(jnp.int32)             # [tm, 1] (-1 = ignore)
    valid = x[:, 3:4]                                 # [tm, 1] (0 on pad-token rows)

    wx = coef_ref[0:1, :]                             # [1, 128]
    wy = coef_ref[1:2, :]                             # [1, 128]
    wv = coef_ref[2:3, :]                             # [1, 128]

    # Single lane-dense transcendental: sin over all 128 fourier lanes.
    # valid gates the cos-group pi/2 phase so appended pad rows encode to 0.
    phase = px * wx + py * wy + valid * wv            # [tm, 128]
    o_ref[:, 0:C_FOURIER] = jnp.sin(phase).astype(o_ref.dtype)   # unmasked 128-lane store

    # One-hot: torch scatters into (max_enum + 2) slots at index state+1, then
    # slices off the first two slots  <=>  onehot[k] = (k == state - 1).
    cls_iota = lax.broadcasted_iota(jnp.int32, (x.shape[0], MAX_ENUM), 1)
    o_ref[:, C_FOURIER:C_OUT] = (cls_iota == (state_i - 1)).astype(o_ref.dtype)


def signal_ia_forward(x, pad_mask=None, *, tm=8192, out_dtype=jnp.float32):
    """x: [B, N, 3] float32 ([x, y, state]); pad_mask: [B, N] bool or None.

    Returns (enc [B, N(+1), 136], pad_mask [B, N(+1)] or None), matching the
    PyTorch module: with a pad_mask a zero pad token is appended per batch.
    """
    B, N, C = x.shape
    assert C == C_IN
    x = x.astype(jnp.float32)

    # Augment rows with a constant valid=1 column (cheap: 16 B/row input-side).
    x_aug = jnp.concatenate([x, jnp.ones((B, N, 1), jnp.float32)], axis=-1)
    if pad_mask is not None:
        # Append the pad token to the *input* so the kernel writes the final
        # [B, N+1, 136] buffer directly (no post-kernel concat of the output).
        x_aug = jnp.concatenate(
            [x_aug, jnp.zeros((B, 1, C_AUG), jnp.float32)], axis=1)
        pad_mask = jnp.concatenate(
            [pad_mask, jnp.zeros_like(pad_mask[:, :1])], axis=1)

    n_tok = x_aug.shape[1]
    M = B * n_tok
    x_flat = x_aug.reshape(M, C_AUG)

    # Row tile: as large as possible (amortize ~0.35 us/grid-step), multiple of
    # 8, but capped so there are always >= 2 grid blocks (v7x has 2 TensorCores
    # sharing the "parallel" grid axis).  Ragged tail handled by Pallas.
    tm_eff = max(8, min(tm, _round_up(pl.cdiv(M, 2), 8)))
    n_blocks = pl.cdiv(M, tm_eff)

    # Double-buffered VMEM: input tile pads 4->128 lanes (512 B/row/buf), output
    # tile pads 136->256 lanes (1024 B/row/buf) => ~3 KiB/row.  Set the scoped
    # limit explicitly so tm=8192 (~24 MiB) also compiles on v5e (16 MiB default)
    # while staying under v7x's 64 MiB physical VMEM.
    vmem_limit = int(min(max(2 * tm_eff * (128 + 256) * 4 + (2 << 20), 16 << 20),
                         48 << 20))

    out = pl.pallas_call(
        signal_ia_kernel,
        out_shape=jax.ShapeDtypeStruct((M, C_OUT), out_dtype),
        grid=(n_blocks,),
        in_specs=[
            pl.BlockSpec((8, C_FOURIER), lambda i: (0, 0)),   # constants, DMA'd once
            pl.BlockSpec((tm_eff, C_AUG), lambda i: (i, 0)),  # token rows
        ],
        out_specs=pl.BlockSpec((tm_eff, C_OUT), lambda i: (i, 0)),
        compiler_params=pltpu.CompilerParams(
            dimension_semantics=("parallel",),
            vmem_limit_bytes=vmem_limit),
    )(_COEF, x_flat)

    enc_x = out.reshape(B, n_tok, C_OUT)
    return enc_x, pad_mask


def signal_ia_reference(x, pad_mask=None):
    """Pure-JAX replica of the PyTorch forward, for verification."""
    px, py, state = x[..., 0:1], x[..., 1:2], x[..., 2:3]
    freqs = jnp.linspace(MIN_FREQ, MAX_FREQ / 2.0, NUM_FREQ)
    gx = px * freqs[None, None, :]
    gy = py * freqs[None, None, :]
    enc = jnp.concatenate(
        [jnp.sin(math.pi * gx), jnp.sin(math.pi * gy),
         jnp.cos(math.pi * gx), jnp.cos(math.pi * gy)], axis=-1)
    idx = state.astype(jnp.int32) + 1                              # [B,N,1]
    onehot_full = (jnp.arange(MAX_ENUM + 2)[None, None, :] == idx).astype(jnp.float32)
    enc = jnp.concatenate([enc, onehot_full[..., 2:]], axis=-1)
    if pad_mask is not None:
        enc = jnp.concatenate([enc, jnp.zeros_like(enc[:, :1, :])], axis=1)
        pad_mask = jnp.concatenate([pad_mask, jnp.zeros_like(pad_mask[:, :1])], axis=1)
    return enc, pad_mask


if __name__ == "__main__":
    key = jax.random.PRNGKey(0)
    k_xy, k_state, k_mask = jax.random.split(key, 3)

    B, N = 2, 8
    xy = jax.random.uniform(k_xy, (B, N, 2), jnp.float32, minval=-1.0, maxval=1.0)
    # class states in [-1, max_enum - 1]; -1 = ignore, 0 = unknown
    state = jax.random.randint(k_state, (B, N, 1), -1, MAX_ENUM).astype(jnp.float32)
    x = jnp.concatenate([xy, state], axis=-1)                      # [B, N, 3]
    pad_mask = jax.random.bernoulli(k_mask, 0.2, (B, N))           # [B, N] bool

    fwd = jax.jit(signal_ia_forward)

    # --- pad_mask path (appends the zero pad token inside the kernel output) ---
    enc_x, out_mask = fwd(x, pad_mask)
    enc_x = jax.block_until_ready(enc_x)
    out_mask = jax.block_until_ready(out_mask)

    ref_enc, ref_mask = signal_ia_reference(x, pad_mask)
    assert enc_x.shape == (B, N + 1, C_OUT), enc_x.shape
    assert out_mask.shape == (B, N + 1), out_mask.shape
    # Tolerance covers the few-ulp-of-argument reassociation (pi folded into the
    # frequency constants, cos computed as sin(t + pi/2)) at |arg| ~ pi*100;
    # structural bugs are O(1).
    assert jnp.allclose(enc_x, ref_enc, atol=5e-4, rtol=5e-4), float(
        jnp.max(jnp.abs(enc_x - ref_enc)))
    assert jnp.array_equal(out_mask, ref_mask)

    # --- no-pad_mask path ---
    enc2, mask2 = fwd(x, None)
    enc2 = jax.block_until_ready(enc2)
    ref2, _ = signal_ia_reference(x, None)
    assert enc2.shape == (B, N, C_OUT), enc2.shape
    assert mask2 is None
    assert jnp.allclose(enc2, ref2, atol=5e-4, rtol=5e-4), float(
        jnp.max(jnp.abs(enc2 - ref2)))

    print("KERNEL_OK")
</pallas_src>

<mosaic_0001>
module attributes {stable_mosaic.version = 11 : i64} {
  func.func @signal_ia_kernel(%arg0: i32, %arg1: memref<8x128xf32, #tpu.memory_space<vmem>>, %arg2: memref<16x4xf32, #tpu.memory_space<vmem>>, %arg3: memref<16x136xf32, #tpu.memory_space<vmem>>) attributes {dimension_semantics = [#tpu.dimension_semantics<parallel>], iteration_bounds = array<i64: 2>, scalar_prefetch = 0 : i64, scratch_operands = 0 : i64, tpu.core_type = #tpu.core_type<tc>, window_params = [{pipeline_mode = #tpu.pipeline_mode<synchronous>, transform_indices = @transform_0, window_bounds = array<i64: 8, 128>}, {transform_indices = @transform_1, window_bounds = array<i64: 16, 4>}, {transform_indices = @transform_2, window_bounds = array<i64: 16, 136>}]} {
    %c0 = arith.constant 0 : index
    %c0_0 = arith.constant 0 : index
    %0 = vector.load %arg2[%c0, %c0_0] : memref<16x4xf32, #tpu.memory_space<vmem>>, vector<16x4xf32>
    %1 = vector.extract_strided_slice %0 {offsets = [0, 0], sizes = [16, 1], strides = [1, 1]} : vector<16x4xf32> to vector<16x1xf32>
    %2 = vector.extract_strided_slice %0 {offsets = [0, 1], sizes = [16, 1], strides = [1, 1]} : vector<16x4xf32> to vector<16x1xf32>
    %3 = vector.extract_strided_slice %0 {offsets = [0, 2], sizes = [16, 1], strides = [1, 1]} : vector<16x4xf32> to vector<16x1xf32>
    %4 = arith.fptosi %3 : vector<16x1xf32> to vector<16x1xi32>
    %5 = vector.extract_strided_slice %0 {offsets = [0, 3], sizes = [16, 1], strides = [1, 1]} : vector<16x4xf32> to vector<16x1xf32>
    %c0_1 = arith.constant 0 : index
    %c0_2 = arith.constant 0 : index
    %6 = vector.load %arg1[%c0_1, %c0_2] : memref<8x128xf32, #tpu.memory_space<vmem>>, vector<1x128xf32>
    %c1 = arith.constant 1 : index
    %c0_3 = arith.constant 0 : index
    %7 = vector.load %arg1[%c1, %c0_3] : memref<8x128xf32, #tpu.memory_space<vmem>>, vector<1x128xf32>
    %c2 = arith.constant 2 : index
    %c0_4 = arith.constant 0 : index
    %8 = vector.load %arg1[%c2, %c0_4] : memref<8x128xf32, #tpu.memory_space<vmem>>, vector<1x128xf32>
    %9 = vector.broadcast %1 : vector<16x1xf32> to vector<16x128xf32>
    %10 = vector.broadcast %6 : vector<1x128xf32> to vector<16x128xf32>
    %11 = arith.mulf %9, %10 : vector<16x128xf32>
    %12 = vector.broadcast %2 : vector<16x1xf32> to vector<16x128xf32>
    %13 = vector.broadcast %7 : vector<1x128xf32> to vector<16x128xf32>
    %14 = arith.mulf %12, %13 : vector<16x128xf32>
    %15 = arith.addf %11, %14 : vector<16x128xf32>
    %16 = vector.broadcast %5 : vector<16x1xf32> to vector<16x128xf32>
    %17 = vector.broadcast %8 : vector<1x128xf32> to vector<16x128xf32>
    %18 = arith.mulf %16, %17 : vector<16x128xf32>
    %19 = arith.addf %15, %18 : vector<16x128xf32>
    %20 = math.sin %19 : vector<16x128xf32>
    %c0_5 = arith.constant 0 : index
    %c0_6 = arith.constant 0 : index
    %21 = vector.load %arg3[%c0_5, %c0_6] : memref<16x136xf32, #tpu.memory_space<vmem>>, vector<16x128xf32>
    tpu.vector_store %arg3[%c0_5, %c0_6], %20 {strides = array<i32>} : memref<16x136xf32, #tpu.memory_space<vmem>>, vector<16x128xf32>,
    %22 = tpu.iota {dimensions = array<i32: 1>} : vector<16x8xi32>
    %c1_i32 = arith.constant 1 : i32
    %23 = vector.broadcast %c1_i32 : i32 to vector<16x1xi32>
    %24 = arith.subi %4, %23 : vector<16x1xi32>
    %25 = vector.broadcast %24 : vector<16x1xi32> to vector<16x8xi32>
    %26 = arith.cmpi eq, %22, %25 : vector<16x8xi32>
    %27 = arith.extui %26 : vector<16x8xi1> to vector<16x8xi32>
    %28 = arith.sitofp %27 : vector<16x8xi32> to vector<16x8xf32>
    %c0_7 = arith.constant 0 : index
    %c128 = arith.constant 128 : index
    %29 = vector.load %arg3[%c0_7, %c128] : memref<16x136xf32, #tpu.memory_space<vmem>>, vector<16x8xf32>
    tpu.vector_store %arg3[%c0_7, %c128], %28 {strides = array<i32>} : memref<16x136xf32, #tpu.memory_space<vmem>>, vector<16x8xf32>,
    return
  }
  func.func @transform_0(%arg0: i32) -> (i32, i32) {
    %c0_i32 = arith.constant 0 : i32
    %c0_i32_0 = arith.constant 0 : i32
    %c0_i32_1 = arith.constant 0 : i32
    return %c0_i32, %c0_i32_0 : i32, i32
  }
  func.func @transform_1(%arg0: i32) -> (i32, i32) {
    %c0_i32 = arith.constant 0 : i32
    %c0_i32_0 = arith.constant 0 : i32
    return %arg0, %c0_i32 : i32, i32
  }
  func.func @transform_2(%arg0: i32) -> (i32, i32) {
    %c0_i32 = arith.constant 0 : i32
    %c0_i32_0 = arith.constant 0 : i32
    return %arg0, %c0_i32 : i32, i32
  }
}

</mosaic_0001>

<llo_original>
// kernel: signal_ia_forward.1
$region0: #{signal_ia_forward.1}
  #allocation0 [shape = 'u32[]', space=smem, size = 0x4, offset = 0x4, fixed_abs, tag = 'smem constant byte address 0x4 - core index']
  #allocation1 [shape = 'u32[144,128]{1,0:T(1,128)}', space=vmem, size = 0x12000, scoped, tag = 'internal scratch']
  %s0 = inlined_call_operand.vmem [shape: f32[8,128], index: 0, kind: input, shape index: {}]
  %s1 = inlined_call_operand.vmem [shape: f32[18,4], index: 1, kind: input, shape index: {}]
  %s2 = inlined_call_operand.vmem [shape: f32[18,136], index: 2, kind: output, shape index: {}]
  %s3 = sld [smem:[#allocation0]]
  $region67: #{signal_ia_forward.1} parent=0
    _
  %s5 = ssub.s32 1, %s3
  %s6 = scalar_select 0, %s5, %s3
  $region1: #{signal_ia_forward.1} parent=0
    #allocation2 [shape = 'u8[32768]{0}', space=vmem, size = 0x8000, scoped, tag = 'output window, operand 0']
    loop: start=0, step=1, limit=4
    $region2: #{signal_ia_forward.1} parent=1 // loop_pre_header
      _
    $region3: #{signal_ia_forward.1} parent=1 // loop_header
      %s8 = sphi 0, %s12
      %p9 = scmp.ge.s32.totalorder %s8, 4
      %s16 = sphi 0, %s16
      %s18 = sphi 0, %s16
      %s19 = sphi 0, %s18
      %s33 = sphi 0, %s19
      %s39 = sphi 0, %s41
      %s42 = sphi 0, %s39
      %s43 = sphi 0, %s42
      %s59 = sphi 0, %s43
      %s65 = sphi 0, %s67
      %s68 = sphi 0, %s65
      %s69 = sphi 0, %s68
      %s85 = sphi 0, %s69
    $region4: #{signal_ia_forward.1} parent=1 // loop_header_branch
      %11 = sbr.rel (%p9) target = $region8
    $region5: #{signal_ia_forward.1} parent=1 // loop_body
      %s13 = ssub.s32 %s8, 1
      %s14 = ssub.s32 %s8, 2
      %s15 = sadd.s32 %s8, 1
      %s17 = sadd.s32 %s16, 1
      %p20 = scmp.eq.s32.totalorder %s8, 1
      %p21 = scmp.ne.s32.totalorder %s16, %s18
      %p22 = scmp.eq.s32.totalorder %s8, 0
      %p23 = por %p21, %p22
      %p24 = scmp.ne.s32.totalorder %s16, %s18
      %p25 = scmp.eq.s32.totalorder %s13, 1
      %p26 = por %p24, %p25
      %p27 = scmp.ne.s32.totalorder %s18, %s19
      %p28 = scmp.eq.s32.totalorder %s13, 0
      %p29 = por %p27, %p28
      %p30 = scmp.ne.s32.totalorder %s18, %s19
      %p31 = scmp.eq.s32.totalorder %s14, 1
      %p32 = por %p30, %p31
      %p34 = scmp.ne.s32.totalorder %s19, %s33
      %p35 = scmp.eq.s32.totalorder %s14, 0
      %p36 = por %p34, %p35
      %s37 = ssub.s32 %s8, %s15
      %p38 = scmp.eq.s32.totalorder %s37, 0
      %s40 = sadd.s32 %s39, 1
      %s41 = scalar_select %p38, %s39, %s40
      %p44 = pneg %p38
      %p45 = scmp.eq.s32.totalorder %s8, 1
      %p46 = por %p44, %p45
      %p47 = scmp.ne.s32.totalorder %s39, %s42
      %p48 = scmp.eq.s32.totalorder %s8, 0
      %p49 = por %p47, %p48
      %p50 = scmp.ne.s32.totalorder %s39, %s42
      %p51 = scmp.eq.s32.totalorder %s13, 1
      %p52 = por %p50, %p51
      %p53 = scmp.ne.s32.totalorder %s42, %s43
      %p54 = scmp.eq.s32.totalorder %s13, 0
      %p55 = por %p53, %p54
      %p56 = scmp.ne.s32.totalorder %s42, %s43
      %p57 = scmp.eq.s32.totalorder %s14, 1
      %p58 = por %p56, %p57
      %p60 = scmp.ne.s32.totalorder %s43, %s59
      %p61 = scmp.eq.s32.totalorder %s14, 0
      %p62 = por %p60, %p61
      %s63 = ssub.s32 %s8, %s15
      %p64 = scmp.eq.s32.totalorder %s63, 0
      %s66 = sadd.s32 %s65, 1
      %s67 = scalar_select %p64, %s65, %s66
      %p70 = pneg %p64
      %p71 = scmp.eq.s32.totalorder %s8, 1
      %p72 = por %p70, %p71
      %p73 = scmp.ne.s32.totalorder %s65, %s68
      %p74 = scmp.eq.s32.totalorder %s8, 0
      %p75 = por %p73, %p74
      %p76 = scmp.ne.s32.totalorder %s65, %s68
      %p77 = scmp.eq.s32.totalorder %s13, 1
      %p78 = por %p76, %p77
      %p79 = scmp.ne.s32.totalorder %s68, %s69
      %p80 = scmp.eq.s32.totalorder %s13, 0
      %p81 = por %p79, %p80
      %p82 = scmp.ne.s32.totalorder %s68, %s69
      %p83 = scmp.eq.s32.totalorder %s14, 1
      %p84 = por %p82, %p83
      %p86 = scmp.ne.s32.totalorder %s69, %s85
      %p87 = scmp.eq.s32.totalorder %s14, 0
      %p88 = por %p86, %p87
      %p89 = scmp.le.s32.totalorder 1, %s8
      %p90 = scmp.lt.s32.totalorder %s8, 3
      %p91 = pnand %p89, %p90
      %p92 = pneg %p91
      // Predicated region
      $region9: #{signal_ia_forward.1} parent=5 // pred_check
        _
      $region10: #{signal_ia_forward.1} parent=5 // pred_check_branch
        %94 = sbr.rel (%p91) target = $region12
      $region11: #{signal_ia_forward.1} parent=5 // pred_region
        %s95 = ssub.s32 %s8, 1
        // Predicated region
        $region13: #{signal_ia_forward.1} parent=11 // pred_check
          %p96 = pneg %p29
        $region14: #{signal_ia_forward.1} parent=11 // pred_check_branch
          %98 = sbr.rel (%p96) target = $region16
        $region15: #{signal_ia_forward.1} parent=11 // pred_region
          _
        $region16: #{signal_ia_forward.1} parent=11 // pred_fallthru
          _
      $region12: #{signal_ia_forward.1} parent=5 // pred_fallthru
        _
      %p99 = scmp.lt.s32.totalorder %s8, 2
      // Predicated region
      $region17: #{signal_ia_forward.1} parent=5 // pred_check
        %p100 = pneg %p99
      $region18: #{signal_ia_forward.1} parent=5 // pred_check_branch
        %102 = sbr.rel (%p100) target = $region20
      $region19: #{signal_ia_forward.1} parent=5 // pred_region
        // Predicated region
        $region21: #{signal_ia_forward.1} parent=19 // pred_check
          %p103 = pneg %p49
        $region22: #{signal_ia_forward.1} parent=19 // pred_check_branch
          %105 = sbr.rel (%p103) target = $region24
        $region23: #{signal_ia_forward.1} parent=19 // pred_region
          %s106 = smul.u32 2, %s8
          %s107 = ssub.s32 3, %s106
          %p108 = scmp.lt.s32.totalorder %s107, 2
          %s109 = scalar_select %p108, %s107, 2
          %s110 = smul.u32 128, %s109
          %p111 = scmp.lt.s32.totalorder %s106, 2
          %s112 = scalar_select %p111, %s106, 2
          %s113 = smul.addr %s112, 8
          %s114 = scalar_lea.vmem %s1, %s113
          %s115 = smul.u32 2, %s8
          %s116 = ssub.s32 3, %s115
          %p117 = scmp.lt.s32.totalorder %s116, 2
          %s118 = scalar_select %p117, %s116, 2
          %s119 = smul.u32 128, %s118
        $region24: #{signal_ia_forward.1} parent=19 // pred_fallthru
          _
      $region20: #{signal_ia_forward.1} parent=5 // pred_fallthru
        _
      %p120 = scmp.le.s32.totalorder 1, %s8
      %p121 = scmp.lt.s32.totalorder %s8, 3
      %p122 = pnand %p120, %p121
      %p123 = pneg %p122
      // Predicated region
      $region25: #{signal_ia_forward.1} parent=5 // pred_check
        _
      $region26: #{signal_ia_forward.1} parent=5 // pred_check_branch
        %125 = sbr.rel (%p122) target = $region28
      $region27: #{signal_ia_forward.1} parent=5 // pred_region
        %s126 = ssub.s32 %s8, 1
        %p127 = pneg %p29
        %p128 = pneg %p26
        %s129 = smul.u32 2, %s13
        %s130 = ssub.s32 3, %s129
        %p131 = scmp.lt.s32.totalorder %s130, 2
        %s132 = scalar_select %p131, %s130, 2
        %s133 = smul.u32 128, %s132
        %p134 = scmp.lt.s32.totalorder %s129, 2
        %s135 = scalar_select %p134, %s129, 2
        %s136 = smul.addr %s135, 8
        %s137 = scalar_lea.vmem %s1, %s136
        %p138 = pneg %p55
        %p139 = pneg %p52
        %p140 = pneg %p81
        %p141 = pneg %p78
        %s142 = sand.u32 %s68, 1
        %s143 = sand.u32 %s68, 1
        %s144 = smul.addr %s143, 32
        %s145 = scalar_lea.vmem [#allocation2], %s144
        %s146 = smul.u32 2, %s13
        %s147 = ssub.s32 3, %s146
        %p148 = scmp.lt.s32.totalorder %s147, 2
        %s149 = scalar_select %p148, %s147, 2
        %s150 = smul.u32 128, %s149
        %p151 = scmp.lt.s32.totalorder %s146, 2
        %s152 = scalar_select %p151, %s146, 2
        %s153 = smul.addr %s152, 8
        %s154 = scalar_lea.vmem %s1, %s153
        %s155 = smul.u32 2, %s13
        %s156 = ssub.s32 3, %s155
        %p157 = scmp.lt.s32.totalorder %s156, 2
        %s158 = scalar_select %p157, %s156, 2
        %s159 = smul.u32 128, %s158
        %s160 = smul.u32 2, %s13
        %s161 = ssub.s32 3, %s160
        %p162 = scmp.lt.s32.totalorder %s161, 2
        %s163 = scalar_select %p162, %s161, 2
        %s164 = smul.u32 128, %s163
        %s165 = smul.u32 %s164, 2
        %v166 = vld [vmem:[%s154] sm:$0xff]
        %v167 = vld [vmem:[%s154 + $0x8] sm:$0xff]
        %v168 = vcvt.f32.s32.to.zero.pseudo %v166
        %v169 = vcvt.f32.s32.to.zero.pseudo %v167
        %v170 = vld [vmem:[%s0] sm:$0x1]
        %v171 = vld [vmem:[%s0 + $0x1] sm:$0x1]
        %v172 = vld [vmem:[%s0 + $0x2] sm:$0x1]
        %174 = vset.pattern.permute.xlu0 0
        %175 = vperm.xlu0 %174, %v166
        %v176 = vpop.permute.xlu0 %175
        %179 = vset.pattern.permute.xlu0 0
        %180 = vperm.xlu0 %179, %v167
        %v181 = vpop.permute.xlu0 %180
        %v183 = vlaneseq
        %v184 = vshrl.u32 %v183, 7
        %v185 = vsub.s32 0, %v184
        %v186 = vrot.slane %v170, %v185
        %v187 = vmul.f32 %v176, %v186
        %v188 = vmul.f32 %v181, %v186
        %189 = vset.pattern.permute.xlu0 1
        %190 = vperm.xlu0 %189, %v166
        %v191 = vpop.permute.xlu0 %190
        %193 = vset.pattern.permute.xlu0 1
        %194 = vperm.xlu0 %193, %v167
        %v195 = vpop.permute.xlu0 %194
        %v197 = vlaneseq
        %v198 = vshrl.u32 %v197, 7
        %v199 = vsub.s32 0, %v198
        %v200 = vrot.slane %v171, %v199
        %v201 = vmul.f32 %v191, %v200
        %v202 = vmul.f32 %v195, %v200
        %v203 = vadd.f32 %v187, %v201
        %v204 = vadd.f32 %v188, %v202
        %205 = vset.pattern.permute.xlu0 3
        %206 = vperm.xlu0 %205, %v166
        %v207 = vpop.permute.xlu0 %206
        %209 = vset.pattern.permute.xlu0 3
        %210 = vperm.xlu0 %209, %v167
        %v211 = vpop.permute.xlu0 %210
        %v213 = vlaneseq
        %v214 = vshrl.u32 %v213, 7
        %v215 = vsub.s32 0, %v214
        %v216 = vrot.slane %v172, %v215
        %v217 = vmul.f32 %v207, %v216
        %v218 = vmul.f32 %v211, %v216
        %v219 = vadd.f32 %v203, %v217
        %v220 = vadd.f32 %v204, %v218
        %v221 = vand.u32 2147483647, %v219
        %vm222 = vcmp.le.f32.partialorder %v221, 0.7853982
        %vm223 = vcmp.lt.s32.totalorder %v219, 0
        %v224 = vand.u32 %v219, 2139095040
        %v225 = vshrl.u32 %v224, 23
        %v226 = vsub.s32 %v225, 127
        %v227 = vand.u32 2147483647, %v219
        %v228 = vand.u32 %v227, 8388607
        %v229 = vor.u32 %v228, 8388608
        %v230 = vsub.s32 0, %v229
        %v231 = vadd.s32 %v226, 1
        %vm232 = vcmp.gt.s32.totalorder %v231, 0
        %v233 = vsel %vm232, %v231, 0
        %v234 = vshrl.u32 %v233, 5
        %v235 = vand.u32 %v233, 31
        %v236 = vsub.s32 32, %v235
        %v237 = vshrl.u32 683565275, %v236
        %v238 = vshll.u32 683565275, %v235
        %v239 = vshrl.u32 2475754826, %v236
        %v240 = vor.u32 %v238, %v239
        %v241 = vshll.u32 2475754826, %v235
        %v242 = vshrl.u32 2131351028, %v236
        %v243 = vor.u32 %v241, %v242
        %v244 = vshll.u32 2131351028, %v235
        %v245 = vshrl.u32 2102212464, %v236
        %v246 = vor.u32 %v244, %v245
        %v247 = vshll.u32 2102212464, %v235
        %v248 = vshrl.u32 920167782, %v236
        %v249 = vor.u32 %v247, %v248
        %v250 = vshll.u32 920167782, %v235
        %v251 = vshrl.u32 1326507024, %v236
        %v252 = vor.u32 %v250, %v251
        %vm253 = vcmp.lt.s32.totalorder %v234, 1
        %vm254 = vcmp.lt.s32.totalorder %v234, 2
        %vm255 = vcmp.lt.s32.totalorder %v234, 3
        %vm256 = vcmp.lt.s32.totalorder %v234, 4
        %v257 = vsel %vm253, %v237, %v240
        %v258 = vsel %vm256, %v246, 2102212464
        %v259 = vsel %vm255, %v243, %v258
        %v260 = vsel %vm254, %v257, %v259
        %v261 = vsel %vm253, %v240, %v243
        %v262 = vsel %vm256, %v249, 920167782
        %v263 = vsel %vm255, %v246, %v262
        %v264 = vsel %vm254, %v261, %v263
        %v265 = vsel %vm253, %v243, %v246
        %v266 = vsel %vm256, %v252, 1326507024
        %v267 = vsel %vm255, %v249, %v266
        %v268 = vsel %vm254, %v265, %v267
        %v269 = vshll.u32 %v229, 8
        %v270 = vmul.u32.u64.compose %v269, %v268
        %v271 = vextract.low.u32 %v270
        %v272 = vextract.high.u32 %v270
        %v273 = vmul.u32.u64.compose %v269, %v264
        %v274 = vextract.low.u32 %v273
        %v275 = vextract.high.u32 %v273
        %v276 = vmul.u32 %v269, %v260
        %v277 = vadd.s32 %v272, %v274
        %vm278 = vc.u32 %v272, %v274
        %v279 = vadd.s32 %v275, 1
        %v280 = vsel %vm278, %v279, %v275
        %v281 = vadd.s32 %v276, %v280
        %v282 = vadd.s32 %v281, 536870912
        %v283 = vshrl.u32 %v282, 30
        %v284 = vshll.u32 %v283, 30
        %v285 = vsub.s32 %v281, %v284
        %vm286 = vcmp.lt.s32.totalorder %v285, 0
        %v287 = vsub.s32 0, %v285
        %v288 = vsel %vm286, %v287, %v285
        %v289 = vclz %v288
        %v290 = vsub.s32 %v289, 2
        %vm291 = vcmp.gt.s32.totalorder 0, %v290
        %v292 = vsel %vm291, 0, %v290
        %v293 = vsub.s32 32, %v292
        %v294 = vshll.u32 %v285, %v292
        %v295 = vshrl.u32 %v277, %v293
        %v296 = vor.u32 %v294, %v295
        %v297 = vsub.s32 4294967266, %v292
        %v298 = vadd.s32 %v297, 127
        %v299 = vshll.u32 %v298, 23
        %v300 = vor.u32 4788187, %v299
        %v301 = vand.u32 2147483647, %v300
        %v303 = vcvt.s32.f32 %v296
        %v304 = vmul.f32 %v303, %v301
        %v305 = vxor.u32 %v304, 2147483648
        %v306 = vsel %vm223, %v305, %v304
        %v307 = vsub.s32 4, %v283
        %v308 = vsel %vm223, %v307, %v283
        %v309 = vsel %vm222, %v219, %v306
        %v310 = vsel %vm222, 0, %v308
        %v311 = vcosq.f32.pop %v309
        %v312 = vsinq.f32.pop %v309
        %vm313 = vweird.f32 %v219
        %v314 = vadd.s32 %v310, 3
        %v315 = vand.u32 %v314, 3
        %vm316 = vcmp.lt.s32.totalorder %v315, 2
        %vm317 = vcmp.eq.s32.totalorder %v315, 0
        %v318 = vxor.u32 %v312, 2147483648
        %v319 = vsel %vm317, %v311, %v318
        %vm320 = vcmp.eq.s32.totalorder %v315, 2
        %v321 = vxor.u32 %v311, 2147483648
        %v322 = vsel %vm320, %v321, %v312
        %v323 = vsel %vm316, %v319, %v322
        %v324 = vsel %vm313, nan, %v323
        %v325 = vand.u32 2147483647, %v220
        %vm326 = vcmp.le.f32.partialorder %v325, 0.7853982
        %vm327 = vcmp.lt.s32.totalorder %v220, 0
        %v328 = vand.u32 %v220, 2139095040
        %v329 = vshrl.u32 %v328, 23
        %v330 = vsub.s32 %v329, 127
        %v331 = vand.u32 2147483647, %v220
        %v332 = vand.u32 %v331, 8388607
        %v333 = vor.u32 %v332, 8388608
        %v334 = vsub.s32 0, %v333
        %v335 = vadd.s32 %v330, 1
        %vm336 = vcmp.gt.s32.totalorder %v335, 0
        %v337 = vsel %vm336, %v335, 0
        %v338 = vshrl.u32 %v337, 5
        %v339 = vand.u32 %v337, 31
        %v340 = vsub.s32 32, %v339
        %v341 = vshrl.u32 683565275, %v340
        %v342 = vshll.u32 683565275, %v339
        %v343 = vshrl.u32 2475754826, %v340
        %v344 = vor.u32 %v342, %v343
        %v345 = vshll.u32 2475754826, %v339
        %v346 = vshrl.u32 2131351028, %v340
        %v347 = vor.u32 %v345, %v346
        %v348 = vshll.u32 2131351028, %v339
        %v349 = vshrl.u32 2102212464, %v340
        %v350 = vor.u32 %v348, %v349
        %v351 = vshll.u32 2102212464, %v339
        %v352 = vshrl.u32 920167782, %v340
        %v353 = vor.u32 %v351, %v352
        %v354 = vshll.u32 920167782, %v339
        %v355 = vshrl.u32 1326507024, %v340
        %v356 = vor.u32 %v354, %v355
        %vm357 = vcmp.lt.s32.totalorder %v338, 1
        %vm358 = vcmp.lt.s32.totalorder %v338, 2
        %vm359 = vcmp.lt.s32.totalorder %v338, 3
        %vm360 = vcmp.lt.s32.totalorder %v338, 4
        %v361 = vsel %vm357, %v341, %v344
        %v362 = vsel %vm360, %v350, 2102212464
        %v363 = vsel %vm359, %v347, %v362
        %v364 = vsel %vm358, %v361, %v363
        %v365 = vsel %vm357, %v344, %v347
        %v366 = vsel %vm360, %v353, 920167782
        %v367 = vsel %vm359, %v350, %v366
        %v368 = vsel %vm358, %v365, %v367
        %v369 = vsel %vm357, %v347, %v350
        %v370 = vsel %vm360, %v356, 1326507024
        %v371 = vsel %vm359, %v353, %v370
        %v372 = vsel %vm358, %v369, %v371
        %v373 = vshll.u32 %v333, 8
        %v374 = vmul.u32.u64.compose %v373, %v372
        %v375 = vextract.low.u32 %v374
        %v376 = vextract.high.u32 %v374
        %v377 = vmul.u32.u64.compose %v373, %v368
        %v378 = vextract.low.u32 %v377
        %v379 = vextract.high.u32 %v377
        %v380 = vmul.u32 %v373, %v364
        %v381 = vadd.s32 %v376, %v378
        %vm382 = vc.u32 %v376, %v378
        %v383 = vadd.s32 %v379, 1
        %v384 = vsel %vm382, %v383, %v379
        %v385 = vadd.s32 %v380, %v384
        %v386 = vadd.s32 %v385, 536870912
        %v387 = vshrl.u32 %v386, 30
        %v388 = vshll.u32 %v387, 30
        %v389 = vsub.s32 %v385, %v388
        %vm390 = vcmp.lt.s32.totalorder %v389, 0
        %v391 = vsub.s32 0, %v389
        %v392 = vsel %vm390, %v391, %v389
        %v393 = vclz %v392
        %v394 = vsub.s32 %v393, 2
        %vm395 = vcmp.gt.s32.totalorder 0, %v394
        %v396 = vsel %vm395, 0, %v394
        %v397 = vsub.s32 32, %v396
        %v398 = vshll.u32 %v389, %v396
        %v399 = vshrl.u32 %v381, %v397
        %v400 = vor.u32 %v398, %v399
        %v401 = vsub.s32 4294967266, %v396
        %v402 = vadd.s32 %v401, 127
        %v403 = vshll.u32 %v402, 23
        %v404 = vor.u32 4788187, %v403
        %v405 = vand.u32 2147483647, %v404
        %v407 = vcvt.s32.f32 %v400
        %v408 = vmul.f32 %v407, %v405
        %v409 = vxor.u32 %v408, 2147483648
        %v410 = vsel %vm327, %v409, %v408
        %v411 = vsub.s32 4, %v387
        %v412 = vsel %vm327, %v411, %v387
        %v413 = vsel %vm326, %v220, %v410
        %v414 = vsel %vm326, 0, %v412
        %v415 = vcosq.f32.pop %v413
        %v416 = vsinq.f32.pop %v413
        %vm417 = vweird.f32 %v220
        %v418 = vadd.s32 %v414, 3
        %v419 = vand.u32 %v418, 3
        %vm420 = vcmp.lt.s32.totalorder %v419, 2
        %vm421 = vcmp.eq.s32.totalorder %v419, 0
        %v422 = vxor.u32 %v416, 2147483648
        %v423 = vsel %vm421, %v415, %v422
        %vm424 = vcmp.eq.s32.totalorder %v419, 2
        %v425 = vxor.u32 %v415, 2147483648
        %v426 = vsel %vm424, %v425, %v416
        %v427 = vsel %vm420, %v423, %v426
        %v428 = vsel %vm417, nan, %v427
        %429 = vst [vmem:[%s145] sm:$0xff] %v324
        %430 = vst [vmem:[%s145 + $0x10] sm:$0xff] %v428
        %v431 = vlaneseq
        %v432 = vand.u32 %v431, 127
        %v433 = vsub.s32 %v168, 1
        %v434 = vsub.s32 %v169, 1
        %435 = vset.pattern.permute.xlu0 2
        %436 = vperm.xlu0 %435, %v433
        %v437 = vpop.permute.xlu0 %436
        %438 = vset.pattern.permute.xlu0 2
        %439 = vperm.xlu0 %438, %v434
        %v440 = vpop.permute.xlu0 %439
        %vm441 = vcmp.eq.s32.totalorder %v432, %v437
        %vm442 = vcmp.eq.s32.totalorder %v432, %v440
        %v443 = vsel %vm441, 1, 0
        %v444 = vsel %vm442, 1, 0
        %v445 = vcvt.s32.f32 %v443
        %v446 = vcvt.s32.f32 %v444
        %vm447 = vcmask 64512
        %448 = vst.msk [vmem:[%s145 + $0x8] sm:$0xff] %vm447, %v445
        %449 = vst.msk [vmem:[%s145 + $0x18] sm:$0xff] %vm447, %v446
        %s450 = sand.u32 %s68, 1
        %s451 = sand.u32 %s68, 1
        %s452 = smul.addr %s451, 32
        %s453 = scalar_lea.vmem [#allocation2], %s452
        // Predicated region
        $region29: #{signal_ia_forward.1} parent=27 // pred_check
          %p454 = pneg %p78
        $region30: #{signal_ia_forward.1} parent=27 // pred_check_branch
          %456 = sbr.rel (%p454) target = $region32
        $region31: #{signal_ia_forward.1} parent=27 // pred_region
          %s457 = smul.u32 2, %s13
          %s458 = ssub.s32 3, %s457
          %p459 = scmp.lt.s32.totalorder %s458, 2
          %s460 = scalar_select %p459, %s458, 2
          %s461 = smul.u32 128, %s460
          %s462 = smul.u32 %s461, 2
          %p463 = scmp.ne.s32.totalorder 0, %s462
          %s464 = smul.addr %s457, 2
          %s465 = smul.addr %s464, 8
          %s466 = scalar_lea.vmem %s2, %s465
          // Predicated region
          $region33: #{signal_ia_forward.1} parent=31 // pred_check
            %p467 = pneg %p463
          $region34: #{signal_ia_forward.1} parent=31 // pred_check_branch
            %469 = sbr.rel (%p467) target = $region36
          $region35: #{signal_ia_forward.1} parent=31 // pred_region
            // Predicated region
            $region37: #{signal_ia_forward.1} parent=35 // pred_check
              _
            $region38: #{signal_ia_forward.1} parent=35 // pred_check_branch
              %471 = sbr.rel (0) target = $region40
            $region39: #{signal_ia_forward.1} parent=35 // pred_region
              %s472 = sshrl.u32 %s460, 1
              // While loop
              $region41: #{signal_ia_forward.1} parent=39 // loop_pre_header
                _
              $region42: #{signal_ia_forward.1} parent=39 // loop_header
                %s474 = sphi 0, %s476
                %p475 = scmp.ge.s32.totalorder %s474, %s472
                %s479 = sphi 0, %s492
                %s480 = sphi %s453, %s495
                %s481 = sphi %s466, %s496
              $region43: #{signal_ia_forward.1} parent=39 // loop_header_branch
                %478 = sbr.rel (%p475) target = $region47
              $region44: #{signal_ia_forward.1} parent=39 // loop_body
                %v482 = vld [vmem:[%s480] sm:$0xff]
                %483 = vst [vmem:[%s481] sm:$0xff] %v482
                %v484 = vld [vmem:[%s480 + $0x10] sm:$0xff]
                %485 = vst [vmem:[%s481 + $0x10] sm:$0xff] %v484
                %v486 = vld [vmem:[%s480 + $0x8] sm:$0xff]
                %487 = vst [vmem:[%s481 + $0x8] sm:$0xff] %v486
                %v488 = vld [vmem:[%s480 + $0x18] sm:$0xff]
                %489 = vst [vmem:[%s481 + $0x18] sm:$0xff] %v488
                %s490 = sadd.s32 1, %s479
                %p491 = scmp.ge.s32.totalorder %s490, %s472
                %s492 = scalar_select %p491, 0, %s490
                %s493 = smul.u32 %s492, 32
                %s494 = smul.u32 %s492, 32
                %s495 = scalar_lea.vmem %s453, %s493 [#allocation2]
                %s496 = scalar_lea.vmem %s466, %s494
              $region45: #{signal_ia_forward.1} parent=39 // loop_footer
                %s476 = sadd.s32 %s474, 1
              $region46: #{signal_ia_forward.1} parent=39 // loop_footer_branch
                %473 = sbr.rel target = $region42
              $region47: #{signal_ia_forward.1} parent=39 // loop_exit
                _
              %s497 = sshrl.u32 %s460, 1
              %s498 = sand.u32 %s460, 1
              %s499 = smul.u32 %s497, 2
              %s500 = smul.u32 16, %s499
              %s501 = scalar_lea.vmem %s453, %s500 [#allocation2]
              %s502 = smul.u32 16, %s499
              %s503 = scalar_lea.vmem %s466, %s502
              // While loop
              $region48: #{signal_ia_forward.1} parent=39 // loop_pre_header
                _
              $region49: #{signal_ia_forward.1} parent=39 // loop_header
                %s505 = sphi 0, %s507
                %p506 = scmp.ge.s32.totalorder %s505, %s498
                %s510 = sphi 0, %s519
                %s511 = sphi %s501, %s522
                %s512 = sphi %s503, %s523
              $region50: #{signal_ia_forward.1} parent=39 // loop_header_branch
                %509 = sbr.rel (%p506) target = $region54
              $region51: #{signal_ia_forward.1} parent=39 // loop_body
                %v513 = vld [vmem:[%s511] sm:$0xff]
                %514 = vst [vmem:[%s512] sm:$0xff] %v513
                %v515 = vld [vmem:[%s511 + $0x8] sm:$0xff]
                %516 = vst [vmem:[%s512 + $0x8] sm:$0xff] %v515
                %s517 = sadd.s32 1, %s510
                %p518 = scmp.ge.s32.totalorder %s517, %s498
                %s519 = scalar_select %p518, 0, %s517
                %s520 = smul.u32 %s519, 16
                %s521 = smul.u32 %s519, 16
                %s522 = scalar_lea.vmem %s501, %s520 [#allocation2]
                %s523 = scalar_lea.vmem %s503, %s521
              $region52: #{signal_ia_forward.1} parent=39 // loop_footer
                %s507 = sadd.s32 %s505, 1
              $region53: #{signal_ia_forward.1} parent=39 // loop_footer_branch
                %504 = sbr.rel target = $region49
              $region54: #{signal_ia_forward.1} parent=39 // loop_exit
                _
            $region40: #{signal_ia_forward.1} parent=35 // pred_fallthru
              _
            // Predicated region
            $region55: #{signal_ia_forward.1} parent=35 // pred_check
              _
            $region56: #{signal_ia_forward.1} parent=35 // pred_check_branch
              %525 = sbr.rel target = $region58
            $region57: #{signal_ia_forward.1} parent=35 // pred_region
              _
            $region58: #{signal_ia_forward.1} parent=35 // pred_fallthru
              _
          $region36: #{signal_ia_forward.1} parent=31 // pred_fallthru
            _
          %526 = vnop
        $region32: #{signal_ia_forward.1} parent=27 // pred_fallthru
          _
      $region28: #{signal_ia_forward.1} parent=5 // pred_fallthru
        _
      %p527 = scmp.le.s32.totalorder 2, %s8
      // Predicated region
      $region59: #{signal_ia_forward.1} parent=5 // pred_check
        %p528 = pneg %p527
      $region60: #{signal_ia_forward.1} parent=5 // pred_check_branch
        %530 = sbr.rel (%p528) target = $region62
      $region61: #{signal_ia_forward.1} parent=5 // pred_region
        %s531 = ssub.s32 %s8, 2
        // Predicated region
        $region63: #{signal_ia_forward.1} parent=61 // pred_check
          %p532 = pneg %p84
        $region64: #{signal_ia_forward.1} parent=61 // pred_check_branch
          %534 = sbr.rel (%p532) target = $region66
        $region65: #{signal_ia_forward.1} parent=61 // pred_region
          %s535 = sand.u32 %s69, 1
          %s536 = sand.u32 %s69, 1
          %s537 = smul.addr %s536, 32
          %s538 = scalar_lea.vmem [#allocation2], %s537
        $region66: #{signal_ia_forward.1} parent=61 // pred_fallthru
          _
      $region62: #{signal_ia_forward.1} parent=5 // pred_fallthru
        _
    $region6: #{signal_ia_forward.1} parent=1 // loop_footer
      %s12 = sadd.s32 1, %s8
    $region7: #{signal_ia_forward.1} parent=1 // loop_footer_branch
      %7 = sbr.rel target = $region3
    $region8: #{signal_ia_forward.1} parent=1 // loop_exit
      _

</llo_original>
